<compile_context>
chip_gen: v7x
topology: tpu7x:2x2x1
jax: 0.10.0
libtpu: 0.0.40
codegen_flags: <defaults>
</compile_context>

<pallas_src>
import jax
import jax.numpy as jnp
from jax.experimental import pallas as pl
from jax.experimental.pallas import tpu as pltpu

KSIZE = 7
PAD = 3  # kernel_size=7 -> padding=3, as in the PyTorch module


def _conv7x7_as_matrix(weight, H, W, dtype):
    """Builds T with shape (H*W, H*W) so that  flat_plane @ T  equals
    Conv2d(1, 1, 7, padding=3, bias=False) applied to the (H, W) plane.

    T[a, k] = weight[iy - oi + PAD, jx - oj + PAD] for source pixel a=(iy, jx)
    and output pixel k=(oi, oj) when the tap lies inside the 7x7 window, else 0.
    Zero padding of the conv input is implicit.  Tiny pure-JAX weight
    preprocessing, evaluated outside the kernel.
    """
    w = weight.reshape(KSIZE, KSIZE).astype(jnp.float32)
    dy = jnp.arange(H)[:, None] - jnp.arange(H)[None, :] + PAD   # (H, H): iy - oi + PAD
    dx = jnp.arange(W)[:, None] - jnp.arange(W)[None, :] + PAD   # (W, W): jx - oj + PAD
    valid = (((dy >= 0) & (dy < KSIZE))[:, None, :, None]
             & ((dx >= 0) & (dx < KSIZE))[None, :, None, :])     # (H, W, H, W)
    taps = w[jnp.clip(dy, 0, KSIZE - 1)[:, None, :, None],
             jnp.clip(dx, 0, KSIZE - 1)[None, :, None, :]]       # (H, W, H, W)
    return jnp.where(valid, taps, 0.0).reshape(H * W, H * W).astype(dtype)


def _spatial_attn_kernel(t_ref, x_ref, o_ref):
    # t_ref: (HW, HW) conv-as-matmul operator (constant block -> fetched once)
    # x_ref: (nb, C, HW) lane-dense slab of input images
    # o_ref: (nb, HW)    lane-dense attention map (keepdim channel squeezed)
    m = jnp.max(x_ref[...], axis=1)          # channel max (sublane/XLU reduce)
    m = m.astype(t_ref.dtype)                # bf16 in -> bf16 MXU operands; f32 no-op
    # 7x7 conv == one MXU matmul against the banded operator (no shifted slices).
    y = jnp.dot(m, t_ref[...], preferred_element_type=jnp.float32)
    # Exact sigmoid with a single EUP transcendental: sigmoid(y) = 0.5*tanh(y/2)+0.5
    o_ref[...] = (0.5 * jnp.tanh(0.5 * y) + 0.5).astype(o_ref.dtype)


def _tpu_hw():
    """(num_tensorcores, vmem_capacity_bytes) with conservative fallbacks.

    Detection must never break the kernel: default to 1 TC (so small batches are
    NOT split across serial grid steps) and a 64-MiB (v7x-class) VMEM budget.
    """
    cores, vmem = 1, 64 * 1024 * 1024
    try:
        info = pltpu.get_tpu_info()
        vmem = int(getattr(info, "vmem_capacity_bytes", vmem))
        for attr in ("num_cores", "num_tensorcores", "tensorcore_count",
                     "cores_per_chip", "num_cores_per_chip"):
            v = getattr(info, attr, None)
            if isinstance(v, int) and v > 0:
                cores = v
                break
    except Exception:
        pass
    return cores, vmem


def _plan_blocks(n_batch, per_image_bytes):
    """Returns (padded_batch, images_per_step, vmem_limit_bytes)."""
    cores, vmem_cap = _tpu_hw()
    if vmem_cap >= 100 * 1024 * 1024:          # v5e / v6e class (128 MiB VMEM)
        target_block, vmem_limit = 16 * 1024 * 1024, 64 * 1024 * 1024
    else:                                       # v7x class (64 MiB) or unknown
        target_block, vmem_limit = 8 * 1024 * 1024, 32 * 1024 * 1024

    n_pad = ((n_batch + 7) // 8) * 8            # sublane-full batch

    # Largest multiple-of-8 divisor of n_pad that (a) keeps the double-buffered
    # input block near the per-generation VMEM target and (b) leaves >= `cores`
    # grid steps only when the part really has >1 TensorCore.
    cap = max(8, (target_block // max(per_image_bytes, 1)) // 8 * 8)
    if cores > 1 and n_pad >= 8 * cores:
        cap = min(cap, n_pad // cores)
    cap = min(cap, n_pad)
    nb, d = 8, 8
    while d <= cap:
        if n_pad % d == 0:
            nb = d
        d += 8
    return n_pad, nb, vmem_limit


def spatial_attention(x, weight):
    """x: (N, C, H, W); weight: (1, 1, 7, 7) or (7, 7).  Returns (N, 1, H, W)."""
    N, C, H, W = x.shape
    HW = H * W

    # bf16 inputs feed the MXU in its native format; otherwise stay f32.
    mat_dtype = jnp.bfloat16 if x.dtype == jnp.bfloat16 else jnp.float32
    t_op = _conv7x7_as_matrix(weight, H, W, mat_dtype)            # (HW, HW)
    op_bytes = HW * HW * t_op.dtype.itemsize
    per_image_bytes = C * HW * x.dtype.itemsize

    n_pad, nb, vmem_limit = _plan_blocks(N, per_image_bytes)

    # Guard the dense-operator path: double-buffered operator + input block must
    # fit the per-generation scoped-VMEM budget (trips first on v7x).
    if 2 * op_bytes + 2 * nb * per_image_bytes > vmem_limit:
        # TODO(synk): dispatch to a pltpu.roll shifted-accumulate kernel for large H*W.
        raise ValueError("H*W too large for the dense conv-as-matmul path")

    xf = x.reshape(N, C, HW)                                      # lane-dense view
    if n_pad != N:                                                # sublane-full batch
        xf = jnp.pad(xf, ((0, n_pad - N), (0, 0), (0, 0)))

    grid = (n_pad // nb,)

    out = pl.pallas_call(
        _spatial_attn_kernel,
        out_shape=jax.ShapeDtypeStruct((n_pad, 1, HW), x.dtype),
        grid=grid,
        in_specs=[
            # Conv operator: constant block index -> DMA'd into VMEM once.  At
            # HW=256 the default double buffer costs only 2 x 256 KiB; single-
            # buffer it (pl.Buffered(1) / scratch copy) if HW grows on v7x.
            pl.BlockSpec((HW, HW), lambda n: (0, 0)),
            # nb images per step, full channel + flattened-spatial extent.
            pl.BlockSpec((nb, C, HW), lambda n: (n, 0, 0)),
        ],
        # keepdim channel is a squeezed size-1 dim; last dim (HW) is a multiple
        # of 128 and nb a multiple of 8 -> fully unmasked lane/sublane stores.
        out_specs=pl.BlockSpec((nb, pl.Squeezed(), HW), lambda n: (n, 0, 0)),
        compiler_params=pltpu.CompilerParams(
            dimension_semantics=("parallel",),
            vmem_limit_bytes=vmem_limit,
        ),
    )(t_op, xf)
    return out[:N].reshape(N, 1, H, W)


def _reference(x, weight):
    # pure-JAX reference: channel max -> conv2d(1->1, k=7, pad=3) -> sigmoid
    m = jnp.max(x, axis=1, keepdims=True)                            # (N,1,H,W)
    w = weight.reshape(1, 1, KSIZE, KSIZE).astype(jnp.float32)
    y = jax.lax.conv_general_dilated(
        m.astype(jnp.float32), w, window_strides=(1, 1),
        padding=((PAD, PAD), (PAD, PAD)),
        dimension_numbers=("NCHW", "OIHW", "NCHW"))
    return jax.nn.sigmoid(y).astype(x.dtype)


if __name__ == "__main__":
    key = jax.random.PRNGKey(0)
    kx, kw = jax.random.split(key)

    N, C, H, W = 2, 4, 16, 16
    x = jax.random.normal(kx, (N, C, H, W), dtype=jnp.float32)
    # Conv2d(1, 1, 7, bias=False) weight in PyTorch layout (O, I, kh, kw);
    # the wrapper accepts either (1,1,7,7) or a pre-squeezed (7,7).
    weight = 0.1 * jax.random.normal(kw, (1, 1, KSIZE, KSIZE), dtype=jnp.float32)

    out = jax.block_until_ready(spatial_attention(x, weight))
    ref = _reference(x, weight)

    assert out.shape == (N, 1, H, W)
    # Tolerance covers EUP tanh + multi-pass f32 MXU rounding (<~1e-3); any
    # structural conv/indexing bug would show up as O(0.1) differences.
    assert jnp.allclose(out, ref, atol=3e-3, rtol=1e-5), "mismatch vs reference"

    print("KERNEL_OK")
</pallas_src>

<mosaic_0001>
module attributes {stable_mosaic.version = 11 : i64} {
  func.func @_spatial_attn_kernel(%arg0: i32, %arg1: memref<256x256xf32, #tpu.memory_space<vmem>>, %arg2: memref<8x4x256xf32, #tpu.memory_space<vmem>>, %arg3: memref<8x1x256xf32, #tpu.memory_space<vmem>>) attributes {dimension_semantics = [#tpu.dimension_semantics<parallel>], iteration_bounds = array<i64: 1>, scalar_prefetch = 0 : i64, scratch_operands = 0 : i64, tpu.core_type = #tpu.core_type<tc>, window_params = [{pipeline_mode = #tpu.pipeline_mode<synchronous>, transform_indices = @transform_0, window_bounds = array<i64: 256, 256>}, {transform_indices = @transform_1, window_bounds = array<i64: 8, 4, 256>}, {transform_indices = @transform_2, window_bounds = array<i64: 8, 1, 256>}]} {
    %c0 = arith.constant 0 : index
    %c0_0 = arith.constant 0 : index
    %c0_1 = arith.constant 0 : index
    %0 = vector.load %arg2[%c0, %c0_0, %c0_1] : memref<8x4x256xf32, #tpu.memory_space<vmem>>, vector<8x4x256xf32>
    %cst = arith.constant dense<0xFF800000> : vector<8x256xf32>
    %1 = vector.multi_reduction <maximumf>, %0, %cst [1] : vector<8x4x256xf32> to vector<8x256xf32>
    %c0_2 = arith.constant 0 : index
    %c0_3 = arith.constant 0 : index
    %2 = vector.load %arg1[%c0_2, %c0_3] : memref<256x256xf32, #tpu.memory_space<vmem>>, vector<256x256xf32>
    %cst_4 = arith.constant dense<0.000000e+00> : vector<8x256xf32>
    %3 = tpu.matmul %1, %2, %cst_4 {dimension_numbers = #tpu.dot_dimension_numbers<[1], [0], [0], [1], [0, 0, 1, 1], [], []>} : vector<8x256xf32>, vector<256x256xf32>, vector<8x256xf32> -> vector<8x256xf32>
    %cst_5 = arith.constant 5.000000e-01 : f32
    %4 = vector.broadcast %cst_5 : f32 to vector<8x256xf32>
    %5 = arith.mulf %4, %3 : vector<8x256xf32>
    %6 = math.tanh %5 : vector<8x256xf32>
    %cst_6 = arith.constant 5.000000e-01 : f32
    %7 = vector.broadcast %cst_6 : f32 to vector<8x256xf32>
    %8 = arith.mulf %7, %6 : vector<8x256xf32>
    %cst_7 = arith.constant 5.000000e-01 : f32
    %9 = vector.broadcast %cst_7 : f32 to vector<8x256xf32>
    %10 = arith.addf %8, %9 : vector<8x256xf32>
    %c0_8 = arith.constant 0 : index
    %c0_9 = arith.constant 0 : index
    %c0_10 = arith.constant 0 : index
    %11 = vector.load %arg3[%c0_8, %c0_9, %c0_10] : memref<8x1x256xf32, #tpu.memory_space<vmem>>, vector<8x1x256xf32>
    %12 = vector.shape_cast %11 : vector<8x1x256xf32> to vector<8x256xf32>
    %13 = vector.shape_cast %10 : vector<8x256xf32> to vector<8x1x256xf32>
    tpu.vector_store %arg3[%c0_8, %c0_9, %c0_10], %13 {strides = array<i32>} : memref<8x1x256xf32, #tpu.memory_space<vmem>>, vector<8x1x256xf32>,
    return
  }
  func.func @transform_0(%arg0: i32) -> (i32, i32) {
    %c0_i32 = arith.constant 0 : i32
    %c0_i32_0 = arith.constant 0 : i32
    %c0_i32_1 = arith.constant 0 : i32
    return %c0_i32, %c0_i32_0 : i32, i32
  }
  func.func @transform_1(%arg0: i32) -> (i32, i32, i32) {
    %c0_i32 = arith.constant 0 : i32
    %c0_i32_0 = arith.constant 0 : i32
    %c0_i32_1 = arith.constant 0 : i32
    return %arg0, %c0_i32, %c0_i32_0 : i32, i32, i32
  }
  func.func @transform_2(%arg0: i32) -> (i32, i32, i32) {
    %c0_i32 = arith.constant 0 : i32
    %c0_i32_0 = arith.constant 0 : i32
    %c0_i32_1 = arith.constant 0 : i32
    return %arg0, %c0_i32, %c0_i32_0 : i32, i32, i32
  }
}

</mosaic_0001>

<llo_original>
// kernel: tpu_custom_call.1
$region0: #{tpu_custom_call.1}
  #allocation0 [shape = 'u32[]', space=smem, size = 0x4, offset = 0x4, fixed_abs, tag = 'smem constant byte address 0x4 - core index']
  #allocation1 [shape = 'u32[144,128]{1,0:T(1,128)}', space=vmem, size = 0x12000, scoped, tag = 'internal scratch']
  %s0 = inlined_call_operand.hbm [shape: f32[256,256], index: 0, kind: input, shape index: {}]
  %s1 = inlined_call_operand.hbm [shape: f32[8,4,256], index: 1, kind: input, shape index: {}]
  %s2 = inlined_call_operand.hbm [shape: f32[8,1,256], index: 2, kind: output, shape index: {}]
  %s3 = sld [smem:[#allocation0]]
  $region26: #{tpu_custom_call.1} parent=0
    _
  %s5 = ssub.s32 1, %s3
  %s6 = scalar_select 0, %s5, %s3
  $region1: #{tpu_custom_call.1} parent=0
    #allocation2 [shape = 'u8[262144]{0}', space=vmem, size = 0x40000, scoped, tag = 'input window, operand 0, single buffered']
    #allocation3 [shape = 's32[1]{0}', space=sflag, size = 0x4, scoped, tag = 'scoped memory for tpu_custom_call.1']
    #allocation4 [shape = 's32[1]{0}', space=sflag, size = 0x4, scoped, tag = 'scoped memory for tpu_custom_call.1']
    #allocation5 [shape = 'u8[32768]{0}', space=vmem, size = 0x8000, scoped, tag = 'input window, operand 1, single buffered']
    #allocation6 [shape = 's32[1]{0}', space=sflag, size = 0x4, scoped, tag = 'scoped memory for tpu_custom_call.1']
    #allocation7 [shape = 'u8[8192]{0}', space=vmem, size = 0x2000, scoped, tag = 'output window, operand 0, single buffered']
    %7 = vsyncpa [#allocation3], 0
    %8 = vsyncpa [#allocation6], 0
    %9 = vsyncpa [#allocation4], 0
    // Predicated region
    $region2: #{tpu_custom_call.1} parent=1 // pred_check
      _
    $region3: #{tpu_custom_call.1} parent=1 // pred_check_branch
      %11 = sbr.rel (0) target = $region5
    $region4: #{tpu_custom_call.1} parent=1 // pred_region
      %s13 = ssub.s32 8192, 8192
      %14 = vsyncadd [#allocation3], %s13
      %s15 = sshll.u32 [#allocation2], 4
      %s16 = int_to_ptr.vmem [resolvable:$true] %s15
      %21 = dma.hbm_to_vmem [thread:$0]  %s0, 8192, %s16, [#allocation3], 256, 256, 16
    $region5: #{tpu_custom_call.1} parent=1 // pred_fallthru
      _
    // Predicated region
    $region6: #{tpu_custom_call.1} parent=1 // pred_check
      _
    $region7: #{tpu_custom_call.1} parent=1 // pred_check_branch
      %23 = sbr.rel (0) target = $region9
    $region8: #{tpu_custom_call.1} parent=1 // pred_region
      %s25 = ssub.s32 1024, 1024
      %26 = vsyncadd [#allocation6], %s25
      %s27 = sshll.u32 [#allocation5], 4
      %s28 = int_to_ptr.vmem [resolvable:$true] %s27
      %33 = dma.hbm_to_vmem [thread:$0]  %s1, 1024, %s28, [#allocation6], 128, 128, 8
    $region9: #{tpu_custom_call.1} parent=1 // pred_fallthru
      _
    // Predicated region
    $region10: #{tpu_custom_call.1} parent=1 // pred_check
      _
    $region11: #{tpu_custom_call.1} parent=1 // pred_check_branch
      %35 = sbr.rel (0) target = $region13
    $region12: #{tpu_custom_call.1} parent=1 // pred_region
      %36 = dma.done [#allocation3], 8192
    $region13: #{tpu_custom_call.1} parent=1 // pred_fallthru
      _
    // Predicated region
    $region14: #{tpu_custom_call.1} parent=1 // pred_check
      _
    $region15: #{tpu_custom_call.1} parent=1 // pred_check_branch
      %38 = sbr.rel (0) target = $region17
    $region16: #{tpu_custom_call.1} parent=1 // pred_region
      %39 = dma.done [#allocation6], 1024
    $region17: #{tpu_custom_call.1} parent=1 // pred_fallthru
      _
    %v40 = vld [vmem:[#allocation5] sm:$0xff]
    %v41 = vld [vmem:[#allocation5 + $0x8] sm:$0xff]
    %v42 = vld [vmem:[#allocation5 + $0x10] sm:$0xff]
    %v43 = vld [vmem:[#allocation5 + $0x18] sm:$0xff]
    %v44 = vld [vmem:[#allocation5 + $0x20] sm:$0xff]
    %v45 = vld [vmem:[#allocation5 + $0x28] sm:$0xff]
    %v46 = vld [vmem:[#allocation5 + $0x30] sm:$0xff]
    %v47 = vld [vmem:[#allocation5 + $0x38] sm:$0xff]
    %v56 = vcombine.high %v40, %v40
    %v57 = vcombine.high %v41, %v41
    %v58 = vcombine.high %v42, %v42
    %v59 = vcombine.high %v43, %v43
    %v60 = vcombine.high %v44, %v44
    %v61 = vcombine.high %v45, %v45
    %v62 = vcombine.high %v46, %v46
    %v63 = vcombine.high %v47, %v47
    %vm72 = vcmask 1043456
    %v73 = vsel %vm72, %v40, -inf
    %v74 = vrot.slane %v73, 4
    %v75 = vmax.f32 %v73, %v74
    %v76 = vrot.slane %v75, 2
    %v77 = vmax.f32 %v75, %v76
    %v78 = vrot.slane %v77, 1
    %v79 = vmax.f32 %v77, %v78
    %v80 = vsel %vm72, %v56, -inf
    %v81 = vrot.slane %v80, 4
    %v82 = vmax.f32 %v80, %v81
    %v83 = vrot.slane %v82, 2
    %v84 = vmax.f32 %v82, %v83
    %v85 = vrot.slane %v84, 1
    %v86 = vmax.f32 %v84, %v85
    %v87 = vsel %vm72, %v41, -inf
    %v88 = vrot.slane %v87, 4
    %v89 = vmax.f32 %v87, %v88
    %v90 = vrot.slane %v89, 2
    %v91 = vmax.f32 %v89, %v90
    %v92 = vrot.slane %v91, 1
    %v93 = vmax.f32 %v91, %v92
    %v94 = vsel %vm72, %v57, -inf
    %v95 = vrot.slane %v94, 4
    %v96 = vmax.f32 %v94, %v95
    %v97 = vrot.slane %v96, 2
    %v98 = vmax.f32 %v96, %v97
    %v99 = vrot.slane %v98, 1
    %v100 = vmax.f32 %v98, %v99
    %v101 = vsel %vm72, %v42, -inf
    %v102 = vrot.slane %v101, 4
    %v103 = vmax.f32 %v101, %v102
    %v104 = vrot.slane %v103, 2
    %v105 = vmax.f32 %v103, %v104
    %v106 = vrot.slane %v105, 1
    %v107 = vmax.f32 %v105, %v106
    %v108 = vsel %vm72, %v58, -inf
    %v109 = vrot.slane %v108, 4
    %v110 = vmax.f32 %v108, %v109
    %v111 = vrot.slane %v110, 2
    %v112 = vmax.f32 %v110, %v111
    %v113 = vrot.slane %v112, 1
    %v114 = vmax.f32 %v112, %v113
    %v115 = vsel %vm72, %v43, -inf
    %v116 = vrot.slane %v115, 4
    %v117 = vmax.f32 %v115, %v116
    %v118 = vrot.slane %v117, 2
    %v119 = vmax.f32 %v117, %v118
    %v120 = vrot.slane %v119, 1
    %v121 = vmax.f32 %v119, %v120
    %v122 = vsel %vm72, %v59, -inf
    %v123 = vrot.slane %v122, 4
    %v124 = vmax.f32 %v122, %v123
    %v125 = vrot.slane %v124, 2
    %v126 = vmax.f32 %v124, %v125
    %v127 = vrot.slane %v126, 1
    %v128 = vmax.f32 %v126, %v127
    %v129 = vsel %vm72, %v44, -inf
    %v130 = vrot.slane %v129, 4
    %v131 = vmax.f32 %v129, %v130
    %v132 = vrot.slane %v131, 2
    %v133 = vmax.f32 %v131, %v132
    %v134 = vrot.slane %v133, 1
    %v135 = vmax.f32 %v133, %v134
    %v136 = vsel %vm72, %v60, -inf
    %v137 = vrot.slane %v136, 4
    %v138 = vmax.f32 %v136, %v137
    %v139 = vrot.slane %v138, 2
    %v140 = vmax.f32 %v138, %v139
    %v141 = vrot.slane %v140, 1
    %v142 = vmax.f32 %v140, %v141
    %v143 = vsel %vm72, %v45, -inf
    %v144 = vrot.slane %v143, 4
    %v145 = vmax.f32 %v143, %v144
    %v146 = vrot.slane %v145, 2
    %v147 = vmax.f32 %v145, %v146
    %v148 = vrot.slane %v147, 1
    %v149 = vmax.f32 %v147, %v148
    %v150 = vsel %vm72, %v61, -inf
    %v151 = vrot.slane %v150, 4
    %v152 = vmax.f32 %v150, %v151
    %v153 = vrot.slane %v152, 2
    %v154 = vmax.f32 %v152, %v153
    %v155 = vrot.slane %v154, 1
    %v156 = vmax.f32 %v154, %v155
    %v157 = vsel %vm72, %v46, -inf
    %v158 = vrot.slane %v157, 4
    %v159 = vmax.f32 %v157, %v158
    %v160 = vrot.slane %v159, 2
    %v161 = vmax.f32 %v159, %v160
    %v162 = vrot.slane %v161, 1
    %v163 = vmax.f32 %v161, %v162
    %v164 = vsel %vm72, %v62, -inf
    %v165 = vrot.slane %v164, 4
    %v166 = vmax.f32 %v164, %v165
    %v167 = vrot.slane %v166, 2
    %v168 = vmax.f32 %v166, %v167
    %v169 = vrot.slane %v168, 1
    %v170 = vmax.f32 %v168, %v169
    %v171 = vsel %vm72, %v47, -inf
    %v172 = vrot.slane %v171, 4
    %v173 = vmax.f32 %v171, %v172
    %v174 = vrot.slane %v173, 2
    %v175 = vmax.f32 %v173, %v174
    %v176 = vrot.slane %v175, 1
    %v177 = vmax.f32 %v175, %v176
    %v178 = vsel %vm72, %v63, -inf
    %v179 = vrot.slane %v178, 4
    %v180 = vmax.f32 %v178, %v179
    %v181 = vrot.slane %v180, 2
    %v182 = vmax.f32 %v180, %v181
    %v183 = vrot.slane %v182, 1
    %v184 = vmax.f32 %v182, %v183
    %v185 = vld [vmem:[#allocation2] sm:$0xff]
    %v186 = vld [vmem:[#allocation2 + $0x8] sm:$0xff]
    %v187 = vld [vmem:[#allocation2 + $0x10] sm:$0xff]
    %v188 = vld [vmem:[#allocation2 + $0x18] sm:$0xff]
    %v189 = vld [vmem:[#allocation2 + $0x20] sm:$0xff]
    %v190 = vld [vmem:[#allocation2 + $0x28] sm:$0xff]
    %v191 = vld [vmem:[#allocation2 + $0x30] sm:$0xff]
    %v192 = vld [vmem:[#allocation2 + $0x38] sm:$0xff]
    %v193 = vld [vmem:[#allocation2 + $0x40] sm:$0xff]
    %v194 = vld [vmem:[#allocation2 + $0x48] sm:$0xff]
    %v195 = vld [vmem:[#allocation2 + $0x50] sm:$0xff]
    %v196 = vld [vmem:[#allocation2 + $0x58] sm:$0xff]
    %v197 = vld [vmem:[#allocation2 + $0x60] sm:$0xff]
    %v198 = vld [vmem:[#allocation2 + $0x68] sm:$0xff]
    %v199 = vld [vmem:[#allocation2 + $0x70] sm:$0xff]
    %v200 = vld [vmem:[#allocation2 + $0x78] sm:$0xff]
    %v201 = vld [vmem:[#allocation2 + $0x80] sm:$0xff]
    %v202 = vld [vmem:[#allocation2 + $0x88] sm:$0xff]
    %v203 = vld [vmem:[#allocation2 + $0x90] sm:$0xff]
    %v204 = vld [vmem:[#allocation2 + $0x98] sm:$0xff]
    %v205 = vld [vmem:[#allocation2 + $0xa0] sm:$0xff]
    %v206 = vld [vmem:[#allocation2 + $0xa8] sm:$0xff]
    %v207 = vld [vmem:[#allocation2 + $0xb0] sm:$0xff]
    %v208 = vld [vmem:[#allocation2 + $0xb8] sm:$0xff]
    %v209 = vld [vmem:[#allocation2 + $0xc0] sm:$0xff]
    %v210 = vld [vmem:[#allocation2 + $0xc8] sm:$0xff]
    %v211 = vld [vmem:[#allocation2 + $0xd0] sm:$0xff]
    %v212 = vld [vmem:[#allocation2 + $0xd8] sm:$0xff]
    %v213 = vld [vmem:[#allocation2 + $0xe0] sm:$0xff]
    %v214 = vld [vmem:[#allocation2 + $0xe8] sm:$0xff]
    %v215 = vld [vmem:[#allocation2 + $0xf0] sm:$0xff]
    %v216 = vld [vmem:[#allocation2 + $0xf8] sm:$0xff]
    %v217 = vld [vmem:[#allocation2 + $0x100] sm:$0xff]
    %v218 = vld [vmem:[#allocation2 + $0x108] sm:$0xff]
    %v219 = vld [vmem:[#allocation2 + $0x110] sm:$0xff]
    %v220 = vld [vmem:[#allocation2 + $0x118] sm:$0xff]
    %v221 = vld [vmem:[#allocation2 + $0x120] sm:$0xff]
    %v222 = vld [vmem:[#allocation2 + $0x128] sm:$0xff]
    %v223 = vld [vmem:[#allocation2 + $0x130] sm:$0xff]
    %v224 = vld [vmem:[#allocation2 + $0x138] sm:$0xff]
    %v225 = vld [vmem:[#allocation2 + $0x140] sm:$0xff]
    %v226 = vld [vmem:[#allocation2 + $0x148] sm:$0xff]
    %v227 = vld [vmem:[#allocation2 + $0x150] sm:$0xff]
    %v228 = vld [vmem:[#allocation2 + $0x158] sm:$0xff]
    %v229 = vld [vmem:[#allocation2 + $0x160] sm:$0xff]
    %v230 = vld [vmem:[#allocation2 + $0x168] sm:$0xff]
    %v231 = vld [vmem:[#allocation2 + $0x170] sm:$0xff]
    %v232 = vld [vmem:[#allocation2 + $0x178] sm:$0xff]
    %v233 = vld [vmem:[#allocation2 + $0x180] sm:$0xff]
    %v234 = vld [vmem:[#allocation2 + $0x188] sm:$0xff]
    %v235 = vld [vmem:[#allocation2 + $0x190] sm:$0xff]
    %v236 = vld [vmem:[#allocation2 + $0x198] sm:$0xff]
    %v237 = vld [vmem:[#allocation2 + $0x1a0] sm:$0xff]
    %v238 = vld [vmem:[#allocation2 + $0x1a8] sm:$0xff]
    %v239 = vld [vmem:[#allocation2 + $0x1b0] sm:$0xff]
    %v240 = vld [vmem:[#allocation2 + $0x1b8] sm:$0xff]
    %v241 = vld [vmem:[#allocation2 + $0x1c0] sm:$0xff]
    %v242 = vld [vmem:[#allocation2 + $0x1c8] sm:$0xff]
    %v243 = vld [vmem:[#allocation2 + $0x1d0] sm:$0xff]
    %v244 = vld [vmem:[#allocation2 + $0x1d8] sm:$0xff]
    %v245 = vld [vmem:[#allocation2 + $0x1e0] sm:$0xff]
    %v246 = vld [vmem:[#allocation2 + $0x1e8] sm:$0xff]
    %v247 = vld [vmem:[#allocation2 + $0x1f0] sm:$0xff]
    %v248 = vld [vmem:[#allocation2 + $0x1f8] sm:$0xff]
    %vm265 = vcmask 1041409
    %v266 = vsel %vm265, %v93, %v79
    %vm267 = vcmask 1042434
    %v268 = vsel %vm267, %v107, %v266
    %vm269 = vcmask 1043459
    %v270 = vsel %vm269, %v121, %v268
    %vm271 = vcmask 1044484
    %v272 = vsel %vm271, %v135, %v270
    %vm273 = vcmask 1045509
    %v274 = vsel %vm273, %v149, %v272
    %vm275 = vcmask 1046534
    %v276 = vsel %vm275, %v163, %v274
    %vm277 = vcmask 1047559
    %v278 = vsel %vm277, %v177, %v276
    %v279 = vsel %vm265, %v100, %v86
    %v280 = vsel %vm267, %v114, %v279
    %v281 = vsel %vm269, %v128, %v280
    %v282 = vsel %vm271, %v142, %v281
    %v283 = vsel %vm273, %v156, %v282
    %v284 = vsel %vm275, %v170, %v283
    %v285 = vsel %vm277, %v184, %v284
    %288 = vmatprep.subr.mxu0 %v186
    %289 = vmatpush1.msra.mxu0 %v185
    %290 = vmatprep.subr.mxu0 %v188
    %291 = vmatpush1.msra.mxu0 %v187
    %292 = vmatprep.subr.mxu0 %v190
    %293 = vmatpush1.msra.mxu0 %v189
    %294 = vmatprep.subr.mxu0 %v192
    %295 = vmatpush1.msra.mxu0 %v191
    %296 = vmatprep.subr.mxu0 %v194
    %297 = vmatpush1.msra.mxu0 %v193
    %298 = vmatprep.subr.mxu0 %v196
    %299 = vmatpush1.msra.mxu0 %v195
    %300 = vmatprep.subr.mxu0 %v198
    %301 = vmatpush1.msra.mxu0 %v197
    %302 = vmatprep.subr.mxu0 %v200
    %303 = vmatpush1.msra.mxu0 %v199
    %304 = vmatprep.subr.mxu0 %v202
    %305 = vmatpush1.msra.mxu0 %v201
    %306 = vmatprep.subr.mxu0 %v204
    %307 = vmatpush1.msra.mxu0 %v203
    %308 = vmatprep.subr.mxu0 %v206
    %309 = vmatpush1.msra.mxu0 %v205
    %310 = vmatprep.subr.mxu0 %v208
    %311 = vmatpush1.msra.mxu0 %v207
    %312 = vmatprep.subr.mxu0 %v210
    %313 = vmatpush1.msra.mxu0 %v209
    %314 = vmatprep.subr.mxu0 %v212
    %315 = vmatpush1.msra.mxu0 %v211
    %316 = vmatprep.subr.mxu0 %v214
    %317 = vmatpush1.msra.mxu0 %v213
    %318 = vmatprep.subr.mxu0 %v216
    %319 = vmatpush1.msra.mxu0 %v215
    %320 = vmatprep.subr.mxu0 %v218
    %321 = vmatpush1.msra.mxu0 %v217
    %322 = vmatprep.subr.mxu0 %v220
    %323 = vmatpush1.msra.mxu0 %v219
    %324 = vmatprep.subr.mxu0 %v222
    %325 = vmatpush1.msra.mxu0 %v221
    %326 = vmatprep.subr.mxu0 %v224
    %327 = vmatpush1.msra.mxu0 %v223
    %328 = vmatprep.subr.mxu0 %v226
    %329 = vmatpush1.msra.mxu0 %v225
    %330 = vmatprep.subr.mxu0 %v228
    %331 = vmatpush1.msra.mxu0 %v227
    %332 = vmatprep.subr.mxu0 %v230
    %333 = vmatpush1.msra.mxu0 %v229
    %334 = vmatprep.subr.mxu0 %v232
    %335 = vmatpush1.msra.mxu0 %v231
    %336 = vmatprep.subr.mxu0 %v234
    %337 = vmatpush1.msra.mxu0 %v233
    %338 = vmatprep.subr.mxu0 %v236
    %339 = vmatpush1.msra.mxu0 %v235
    %340 = vmatprep.subr.mxu0 %v238
    %341 = vmatpush1.msra.mxu0 %v237
    %342 = vmatprep.subr.mxu0 %v240
    %343 = vmatpush1.msra.mxu0 %v239
    %344 = vmatprep.subr.mxu0 %v242
    %345 = vmatpush1.msra.mxu0 %v241
    %346 = vmatprep.subr.mxu0 %v244
    %347 = vmatpush1.msra.mxu0 %v243
    %348 = vmatprep.subr.mxu0 %v246
    %349 = vmatpush1.msra.mxu0 %v245
    %350 = vmatprep.subr.mxu0 %v248
    %351 = vmatpush1.msra.mxu0 %v247
    %352 = vmatprep.mubr.f32.mxu0 %v285
    %353 = vmatmul.mubr.f32.gmra.mrb[0].mxu0 %v278
    %v354 = vpop.f32.mrb[0].mxu0
    %v355 = vadd.f32 0.0, %v354
    %v356 = vpop.f32.mrb[0].mxu0
    %v357 = vadd.f32 0.0, %v356
    %358 = vdwg.mxu0
    %v359 = vmul.f32 %v355, 0.5
    %v360 = vmul.f32 %v357, 0.5
    %v361 = vtanh.pop %v359
    %v362 = vtanh.pop %v360
    %v363 = vmul.f32 %v361, 0.5
    %v364 = vmul.f32 %v362, 0.5
    %v365 = vadd.f32 %v363, 0.5
    %v366 = vadd.f32 %v364, 0.5
    %v369 = vcombine.low %v365, %v366
    %v370 = vcombine.high %v365, %v366
    %v372 = vunpack.c.l.s4 1966171168
    %v373 = vunpack.c.0.s8 %v372
    %v374 = vlaneseq
    %v375 = vshrl.u32 %v374, 7
    %v376 = vsub.s32 %v373, %v375
    %v377 = vrot.slane %v369, %v376
    %v379 = vunpack.c.l.s4 1966171168
    %v380 = vunpack.c.0.s8 %v379
    %v381 = vlaneseq
    %v382 = vshrl.u32 %v381, 7
    %v383 = vsub.s32 %v380, %v382
    %v384 = vrot.slane %v370, %v383
    %v385 = vcombine.high %v377, %v377
    %v386 = vcombine.high %v384, %v384
    %v388 = vunpack.c.l.s4 1966171168
    %v389 = vunpack.c.0.s8 %v388
    %v390 = vlaneseq
    %v391 = vshrl.u32 %v390, 7
    %v392 = vsub.s32 %v389, %v391
    %v393 = vrot.slane %v377, %v392
    %v395 = vunpack.c.l.s4 1966171168
    %v396 = vunpack.c.0.s8 %v395
    %v397 = vlaneseq
    %v398 = vshrl.u32 %v397, 7
    %v399 = vsub.s32 %v396, %v398
    %v400 = vrot.slane %v384, %v399
    %v402 = vunpack.c.l.s4 1966171168
    %v403 = vunpack.c.0.s8 %v402
    %v404 = vlaneseq
    %v405 = vshrl.u32 %v404, 7
    %v406 = vsub.s32 %v403, %v405
    %v407 = vrot.slane %v385, %v406
    %v409 = vunpack.c.l.s4 1966171168
    %v410 = vunpack.c.0.s8 %v409
    %v411 = vlaneseq
    %v412 = vshrl.u32 %v411, 7
    %v413 = vsub.s32 %v410, %v412
    %v414 = vrot.slane %v386, %v413
    %v415 = vcombine.high %v393, %v393
    %v416 = vcombine.high %v400, %v400
    %v417 = vcombine.high %v407, %v407
    %v418 = vcombine.high %v414, %v414
    %v427 = vlaneseq
    %vm428 = vcmp.ge.s32.totalorder %v427, 0
    %vm429 = vcmp.lt.s32.totalorder %v427, 256
    %vm430 = vmand %vm428, %vm429
    %431 = vst.msk [vmem:[#allocation7] sm:$0x3] %vm430, %v393
    %432 = vst.msk [vmem:[#allocation7 + $0x2] sm:$0x3] %vm430, %v407
    %433 = vst.msk [vmem:[#allocation7 + $0x4] sm:$0x3] %vm430, %v415
    %434 = vst.msk [vmem:[#allocation7 + $0x6] sm:$0x3] %vm430, %v417
    %435 = vst.msk [vmem:[#allocation7 + $0x8] sm:$0x3] %vm430, %v400
    %436 = vst.msk [vmem:[#allocation7 + $0xa] sm:$0x3] %vm430, %v414
    %437 = vst.msk [vmem:[#allocation7 + $0xc] sm:$0x3] %vm430, %v416
    %438 = vst.msk [vmem:[#allocation7 + $0xe] sm:$0x3] %vm430, %v418
    // Predicated region
    $region18: #{tpu_custom_call.1} parent=1 // pred_check
      _
    $region19: #{tpu_custom_call.1} parent=1 // pred_check_branch
      %440 = sbr.rel (0) target = $region21
    $region20: #{tpu_custom_call.1} parent=1 // pred_region
      %s442 = ssub.s32 256, 256
      %443 = vsyncadd [#allocation4], %s442
      %s444 = sshll.u32 [#allocation7], 4
      %s445 = int_to_ptr.vmem [resolvable:$true] %s444
      %450 = dma.vmem_to_hbm [thread:$0]  %s445, 256, %s2, [#allocation4], 32, 32, 2
    $region21: #{tpu_custom_call.1} parent=1 // pred_fallthru
      _
    // Predicated region
    $region22: #{tpu_custom_call.1} parent=1 // pred_check
      _
    $region23: #{tpu_custom_call.1} parent=1 // pred_check_branch
      %452 = sbr.rel (0) target = $region25
    $region24: #{tpu_custom_call.1} parent=1 // pred_region
      %453 = dma.done [#allocation4], 256
    $region25: #{tpu_custom_call.1} parent=1 // pred_fallthru
      _
    %454 = vsyncpa [#allocation3], 1
    %455 = vsyncpa [#allocation6], 1
    %456 = vsyncpa [#allocation4], 1

</llo_original>
